<compile_context>
chip_gen: v6e
topology: v6e:2x2x1
jax: 0.10.0
libtpu: 0.0.40
codegen_flags: <defaults>
</compile_context>

<pallas_src>
import functools
import math

import jax
import jax.numpy as jnp
from jax.experimental import pallas as pl
from jax.experimental.pallas import tpu as pltpu

_LANE = 128
_SUBLANE = 8
_LOG_CLAMP = -100.0  # PyTorch BCELoss clamps log() at -100


def _bce_weighted_partial_kernel(*refs, tile_rows, has_weight):
    """Accumulate the weighted-BCE partial sum of one (tile_rows, 128) block.

    The (8,128) output block has a constant index_map, so it stays resident in
    VMEM across the whole grid and acts as the accumulator.  All per-element
    work is VPU/EUP; there is no cross-lane reduce inside the kernel.
    """
    if has_weight:
        o_ref, t_ref, w_ref, acc_ref = refs
    else:
        o_ref, t_ref, acc_ref = refs
        w_ref = None

    @pl.when(pl.program_id(0) == 0)
    def _():
        acc_ref[...] = jnp.zeros_like(acc_ref)

    # Cast in-kernel (free VPU work); inputs stream in their native dtype.
    o = o_ref[...].astype(jnp.float32)
    t = t_ref[...].astype(jnp.float32)
    # Two-log form kept: targets are not guaranteed binary (soft targets allowed).
    log_o = jnp.maximum(jnp.log(o), _LOG_CLAMP)
    log_1mo = jnp.maximum(jnp.log(1.0 - o), _LOG_CLAMP)
    loss = -(t * log_o + (1.0 - t) * log_1mo)
    if has_weight:
        loss = loss * w_ref[...].astype(jnp.float32)

    # Bucket the (tile_rows,128) tile into the resident (8,128) accumulator with
    # pure VPU adds; the single cross-lane reduction happens in the wrapper.
    acc_ref[...] += jnp.sum(
        loss.reshape(tile_rows // _SUBLANE, _SUBLANE, _LANE), axis=0)


def _loss_sum_jax(o, t, w):
    """Plain-JAX weighted-BCE sum (tiny-input fast path and ragged-tail epilogue)."""
    o = o.astype(jnp.float32)
    t = t.astype(jnp.float32)
    log_o = jnp.maximum(jnp.log(o), _LOG_CLAMP)
    log_1mo = jnp.maximum(jnp.log(1.0 - o), _LOG_CLAMP)
    loss = -(t * log_o + (1.0 - t) * log_1mo)
    if w is not None:
        loss = loss * w.astype(jnp.float32)
    return jnp.sum(loss)


def _row_granule(dtype):
    """Second-minor block granularity for a dtype: (8,128) f32, (16,128) bf16, (32,128) int8."""
    itemsize = dtype.itemsize
    if itemsize >= 4:
        return _SUBLANE
    return _SUBLANE * (4 // itemsize)


def bce_loss_weighted(output, target, weight, *, tile_rows=1024,
                      min_kernel_elements=65536):
    """Equivalent of BCELossWeighted().forward(output, target, weight)."""
    output = jnp.asarray(output)
    target = jnp.asarray(target)
    weight = jnp.asarray(weight)

    shape = jnp.broadcast_shapes(output.shape, target.shape, weight.shape)
    n = math.prod(shape)

    def _bcast(x):
        # No-op when shapes already match (the common DACS case) -> no HBM copy.
        return x if x.shape == shape else jnp.broadcast_to(x, shape)

    scalar_weight = weight.size == 1
    if scalar_weight:
        # Never stream a uniform weight: apply it once after the reduction.
        w_scalar = weight.astype(jnp.float32).reshape(())
        w_flat = None
    else:
        w_scalar = None
        # TODO(synk): small non-scalar weights (e.g. per-channel) still materialise a full
        # broadcast here; an SMEM-resident weight table + in-kernel broadcast would avoid it.
        w_flat = _bcast(weight).reshape(-1)

    o_flat = _bcast(output).reshape(-1)   # reshape of a contiguous array: free
    t_flat = _bcast(target).reshape(-1)

    streamed = [o_flat, t_flat] + ([] if w_flat is None else [w_flat])

    use_kernel = (n >= max(min_kernel_elements, 1)) and (n % _LANE == 0)
    tile = 0
    if use_kernel:
        rows = n // _LANE
        granule = max(_row_granule(x.dtype) for x in streamed)
        tile = (min(tile_rows, rows) // granule) * granule
        if tile <= 0:
            use_kernel = False

    if not use_kernel:
        # Tiny inputs (launch/per-step overhead dominates) or n % 128 != 0 (no free
        # (rows,128) view): XLA's fused elementwise+reduce is at/near roofline here.
        total = _loss_sum_jax(o_flat, t_flat, w_flat)
    else:
        rows = n // _LANE
        num_tiles = rows // tile
        rows_main = num_tiles * tile

        # Pass the FULL (rows,128) views; the grid only touches rows [0, rows_main),
        # so the ragged tail is never DMA'd and no pad/slice copy of the bulk happens.
        inputs = tuple(x.reshape(rows, _LANE) for x in streamed)

        kernel = functools.partial(
            _bce_weighted_partial_kernel,
            tile_rows=tile,
            has_weight=w_flat is not None,
        )

        in_spec = pl.BlockSpec((tile, _LANE), lambda i: (i, 0))
        # TODO(synk): on 2-TensorCore chips (v7x) add a leading CORE_PARALLEL grid axis so
        # both cores stream half the rows; single-TC v5e/v6e want exactly this single axis.
        partial_sums = pl.pallas_call(
            kernel,
            out_shape=jax.ShapeDtypeStruct((_SUBLANE, _LANE), jnp.float32),
            grid=(num_tiles,),
            in_specs=[in_spec] * len(inputs),
            out_specs=pl.BlockSpec((_SUBLANE, _LANE), lambda i: (0, 0)),
            compiler_params=pltpu.CompilerParams(
                dimension_semantics=("arbitrary",),
            ),
        )(*inputs)

        # Single tiny cross-lane reduce over 1024 f32; XLA fuses it with the scalar epilogue.
        total = jnp.sum(partial_sums)

        if rows_main < rows:
            # Ragged tail: < tile*128 elements, handled in plain JAX (cheap small slice).
            s = rows_main * _LANE
            total = total + _loss_sum_jax(
                o_flat[s:], t_flat[s:], None if w_flat is None else w_flat[s:])

    if scalar_weight:
        total = total * w_scalar
    # Mean over all elements of the broadcast shape.
    return total / jnp.float32(n)


def _reference(output, target, weight):
    o = jnp.asarray(output).astype(jnp.float32)
    t = jnp.asarray(target).astype(jnp.float32)
    w = jnp.asarray(weight).astype(jnp.float32)
    log_o = jnp.maximum(jnp.log(o), _LOG_CLAMP)
    log_1mo = jnp.maximum(jnp.log(1.0 - o), _LOG_CLAMP)
    loss = -(t * log_o + (1.0 - t) * log_1mo)
    return jnp.mean(loss * w)


if __name__ == "__main__":
    key = jax.random.PRNGKey(0)
    k1, k2, k3, k4, k5, k6 = jax.random.split(key, 6)

    # NCHW: batch=2, channels=4, spatial=16x16  (2048 elements).
    shape = (2, 4, 16, 16)
    output = jax.nn.sigmoid(jax.random.normal(k1, shape, dtype=jnp.float32))
    target = (jax.random.uniform(k2, shape) > 0.5).astype(jnp.float32)
    weight = jax.random.uniform(k3, shape, dtype=jnp.float32)

    # 1) Full per-element weight through the Pallas kernel (forced at this small size;
    #    by default such tiny inputs take the fused-XLA fast path).
    res = jax.block_until_ready(
        bce_loss_weighted(output, target, weight, min_kernel_elements=1))
    ref = jax.block_until_ready(_reference(output, target, weight))
    assert jnp.allclose(res, ref, rtol=1e-5, atol=1e-5), (res, ref)

    # 2) Scalar weight (weight is never streamed through the kernel).
    w_s = jnp.float32(0.37)
    res_s = jax.block_until_ready(
        bce_loss_weighted(output, target, w_s, min_kernel_elements=1))
    ref_s = jax.block_until_ready(_reference(output, target, w_s))
    assert jnp.allclose(res_s, ref_s, rtol=1e-5, atol=1e-5), (res_s, ref_s)

    # 3) Native bf16 streaming + ragged tail (rows=30 is not a multiple of the
    #    16-row bf16-granule tile -> the pure-JAX tail epilogue runs).
    shape2 = (3, 5, 16, 16)
    out2 = jax.nn.sigmoid(jax.random.normal(k4, shape2)).astype(jnp.bfloat16)
    tgt2 = (jax.random.uniform(k5, shape2) > 0.5).astype(jnp.bfloat16)
    wgt2 = jax.random.uniform(k6, shape2, dtype=jnp.float32)
    res_b = jax.block_until_ready(
        bce_loss_weighted(out2, tgt2, wgt2, min_kernel_elements=1))
    ref_b = jax.block_until_ready(_reference(out2, tgt2, wgt2))
    assert jnp.allclose(res_b, ref_b, rtol=1e-5, atol=1e-5), (res_b, ref_b)

    # 4) Default small-input fast path (no pallas_call) still matches.
    res_d = jax.block_until_ready(bce_loss_weighted(output, target, weight))
    assert jnp.allclose(res_d, ref, rtol=1e-5, atol=1e-5), (res_d, ref)

    print("KERNEL_OK")
</pallas_src>

<mosaic_0001>
module attributes {stable_mosaic.version = 11 : i64} {
  func.func @_bce_weighted_partial_kernel(%arg0: i32, %arg1: memref<16x128xf32, #tpu.memory_space<vmem>>, %arg2: memref<16x128xf32, #tpu.memory_space<vmem>>, %arg3: memref<16x128xf32, #tpu.memory_space<vmem>>, %arg4: memref<8x128xf32, #tpu.memory_space<vmem>>) attributes {dimension_semantics = [#tpu.dimension_semantics<arbitrary>], iteration_bounds = array<i64: 1>, scalar_prefetch = 0 : i64, scratch_operands = 0 : i64, tpu.core_type = #tpu.core_type<tc>, window_params = [{transform_indices = @transform_0, window_bounds = array<i64: 16, 128>}, {transform_indices = @transform_1, window_bounds = array<i64: 16, 128>}, {transform_indices = @transform_2, window_bounds = array<i64: 16, 128>}, {pipeline_mode = #tpu.pipeline_mode<synchronous>, transform_indices = @transform_3, window_bounds = array<i64: 8, 128>}]} {
    %c0_i32 = arith.constant 0 : i32
    %0 = arith.cmpi eq, %arg0, %c0_i32 : i32
    %1 = arith.extui %0 : i1 to i32
    %c0_i32_0 = arith.constant 0 : i32
    %2 = arith.cmpi ne, %1, %c0_i32_0 : i32
    scf.if %2 {
      %cst_15 = arith.constant 0.000000e+00 : f32
      %27 = vector.broadcast %cst_15 : f32 to vector<8x128xf32>
      %c0_16 = arith.constant 0 : index
      %c0_17 = arith.constant 0 : index
      %28 = vector.load %arg4[%c0_16, %c0_17] : memref<8x128xf32, #tpu.memory_space<vmem>>, vector<8x128xf32>
      tpu.vector_store %arg4[%c0_16, %c0_17], %27 {strides = array<i32>} : memref<8x128xf32, #tpu.memory_space<vmem>>, vector<8x128xf32>,
    } else {
    }
    %c0 = arith.constant 0 : index
    %c0_1 = arith.constant 0 : index
    %3 = vector.load %arg1[%c0, %c0_1] : memref<16x128xf32, #tpu.memory_space<vmem>>, vector<16x128xf32>
    %c0_2 = arith.constant 0 : index
    %c0_3 = arith.constant 0 : index
    %4 = vector.load %arg2[%c0_2, %c0_3] : memref<16x128xf32, #tpu.memory_space<vmem>>, vector<16x128xf32>
    %5 = math.log %3 : vector<16x128xf32>
    %cst = arith.constant -1.000000e+02 : f32
    %6 = vector.broadcast %cst : f32 to vector<16x128xf32>
    %7 = arith.maximumf %5, %6 : vector<16x128xf32>
    %cst_4 = arith.constant 1.000000e+00 : f32
    %8 = vector.broadcast %cst_4 : f32 to vector<16x128xf32>
    %9 = arith.subf %8, %3 : vector<16x128xf32>
    %10 = math.log %9 : vector<16x128xf32>
    %cst_5 = arith.constant -1.000000e+02 : f32
    %11 = vector.broadcast %cst_5 : f32 to vector<16x128xf32>
    %12 = arith.maximumf %10, %11 : vector<16x128xf32>
    %13 = arith.mulf %4, %7 : vector<16x128xf32>
    %cst_6 = arith.constant 1.000000e+00 : f32
    %14 = vector.broadcast %cst_6 : f32 to vector<16x128xf32>
    %15 = arith.subf %14, %4 : vector<16x128xf32>
    %16 = arith.mulf %15, %12 : vector<16x128xf32>
    %17 = arith.addf %13, %16 : vector<16x128xf32>
    %cst_7 = arith.constant 0.000000e+00 : f32
    %18 = vector.broadcast %cst_7 : f32 to vector<16x128xf32>
    %19 = arith.subf %18, %17 : vector<16x128xf32>
    %c0_8 = arith.constant 0 : index
    %c0_9 = arith.constant 0 : index
    %20 = vector.load %arg3[%c0_8, %c0_9] : memref<16x128xf32, #tpu.memory_space<vmem>>, vector<16x128xf32>
    %21 = arith.mulf %19, %20 : vector<16x128xf32>
    %c0_10 = arith.constant 0 : index
    %c0_11 = arith.constant 0 : index
    %22 = vector.load %arg4[%c0_10, %c0_11] : memref<8x128xf32, #tpu.memory_space<vmem>>, vector<8x128xf32>
    %23 = vector.shape_cast %21 : vector<16x128xf32> to vector<2x8x128xf32>
    %cst_12 = arith.constant dense<0.000000e+00> : vector<8x128xf32>
    %24 = vector.multi_reduction <add>, %23, %cst_12 [0] : vector<2x8x128xf32> to vector<8x128xf32>
    %25 = arith.addf %22, %24 : vector<8x128xf32>
    %c0_13 = arith.constant 0 : index
    %c0_14 = arith.constant 0 : index
    %26 = vector.load %arg4[%c0_13, %c0_14] : memref<8x128xf32, #tpu.memory_space<vmem>>, vector<8x128xf32>
    tpu.vector_store %arg4[%c0_13, %c0_14], %25 {strides = array<i32>} : memref<8x128xf32, #tpu.memory_space<vmem>>, vector<8x128xf32>,
    return
  }
  func.func @transform_0(%arg0: i32) -> (i32, i32) {
    %c0_i32 = arith.constant 0 : i32
    %c0_i32_0 = arith.constant 0 : i32
    return %arg0, %c0_i32 : i32, i32
  }
  func.func @transform_1(%arg0: i32) -> (i32, i32) {
    %c0_i32 = arith.constant 0 : i32
    %c0_i32_0 = arith.constant 0 : i32
    return %arg0, %c0_i32 : i32, i32
  }
  func.func @transform_2(%arg0: i32) -> (i32, i32) {
    %c0_i32 = arith.constant 0 : i32
    %c0_i32_0 = arith.constant 0 : i32
    return %arg0, %c0_i32 : i32, i32
  }
  func.func @transform_3(%arg0: i32) -> (i32, i32) {
    %c0_i32 = arith.constant 0 : i32
    %c0_i32_0 = arith.constant 0 : i32
    %c0_i32_1 = arith.constant 0 : i32
    return %c0_i32, %c0_i32_0 : i32, i32
  }
}

</mosaic_0001>

<llo_original>
// kernel: tpu_custom_call.1
$region0: #{tpu_custom_call.1}
  #allocation0 [shape = 'u32[]', space=smem, size = 0x4, offset = 0x4, fixed_abs, tag = 'smem constant byte address 0x4 - core index']
  #allocation1 [shape = 'u32[144,128]{1,0:T(1,128)}', space=vmem, size = 0x12000, scoped, tag = 'internal scratch']
  %s0 = inlined_call_operand.hbm [shape: f32[16,128], index: 0, kind: input, shape index: {}]
  %s1 = inlined_call_operand.hbm [shape: f32[16,128], index: 1, kind: input, shape index: {}]
  %s2 = inlined_call_operand.hbm [shape: f32[16,128], index: 2, kind: input, shape index: {}]
  %s3 = inlined_call_operand.hbm [shape: f32[8,128], index: 3, kind: output, shape index: {}]
  %s4 = sld [smem:[#allocation0]]
  $region38: #{tpu_custom_call.1} parent=0
    _
  %s6 = ssub.s32 1, %s4
  %s7 = scalar_select 0, %s6, %s4
  $region1: #{tpu_custom_call.1} parent=0
    #allocation2 [shape = 'u8[8192]{0}', space=vmem, size = 0x2000, scoped, tag = 'input window, operand 0, single buffered']
    #allocation3 [shape = 's32[1]{0}', space=sflag, size = 0x4, scoped, tag = 'scoped memory for tpu_custom_call.1']
    #allocation4 [shape = 's32[1]{0}', space=sflag, size = 0x4, scoped, tag = 'scoped memory for tpu_custom_call.1']
    #allocation5 [shape = 'u8[8192]{0}', space=vmem, size = 0x2000, scoped, tag = 'input window, operand 1, single buffered']
    #allocation6 [shape = 's32[1]{0}', space=sflag, size = 0x4, scoped, tag = 'scoped memory for tpu_custom_call.1']
    #allocation7 [shape = 'u8[8192]{0}', space=vmem, size = 0x2000, scoped, tag = 'input window, operand 2, single buffered']
    #allocation8 [shape = 'u8[4096]{0}', space=vmem, size = 0x1000, scoped, tag = 'output window, operand 0, single buffered']
    %8 = vsyncpa [#allocation3], 0
    %9 = vsyncpa [#allocation6], 0
    %10 = vsyncpa [#allocation4], 0
    // Predicated region
    $region2: #{tpu_custom_call.1} parent=1 // pred_check
      _
    $region3: #{tpu_custom_call.1} parent=1 // pred_check_branch
      %12 = sbr.rel (0) target = $region5
    $region4: #{tpu_custom_call.1} parent=1 // pred_region
      %s14 = ssub.s32 256, 256
      %15 = vsyncadd [#allocation3], %s14
      %s16 = sshll.u32 [#allocation2], 4
      %s17 = int_to_ptr.vmem [resolvable:$true] %s16
      %22 = dma.hbm_to_vmem [thread:$0]  %s0, 256, %s17, [#allocation3], 128, 128, 8
    $region5: #{tpu_custom_call.1} parent=1 // pred_fallthru
      _
    // Predicated region
    $region6: #{tpu_custom_call.1} parent=1 // pred_check
      _
    $region7: #{tpu_custom_call.1} parent=1 // pred_check_branch
      %24 = sbr.rel (0) target = $region9
    $region8: #{tpu_custom_call.1} parent=1 // pred_region
      %s26 = ssub.s32 256, 256
      %27 = vsyncadd [#allocation6], %s26
      %s28 = sshll.u32 [#allocation5], 4
      %s29 = int_to_ptr.vmem [resolvable:$true] %s28
      %34 = dma.hbm_to_vmem [thread:$0]  %s1, 256, %s29, [#allocation6], 128, 128, 8
    $region9: #{tpu_custom_call.1} parent=1 // pred_fallthru
      _
    // Predicated region
    $region10: #{tpu_custom_call.1} parent=1 // pred_check
      _
    $region11: #{tpu_custom_call.1} parent=1 // pred_check_branch
      %36 = sbr.rel (0) target = $region13
    $region12: #{tpu_custom_call.1} parent=1 // pred_region
      %s38 = ssub.s32 256, 256
      %39 = vsyncadd [#allocation6], %s38
      %s40 = sshll.u32 [#allocation7], 4
      %s41 = int_to_ptr.vmem [resolvable:$true] %s40
      %46 = dma.hbm_to_vmem [thread:$0]  %s2, 256, %s41, [#allocation6], 128, 128, 8
    $region13: #{tpu_custom_call.1} parent=1 // pred_fallthru
      _
    // Predicated region
    $region14: #{tpu_custom_call.1} parent=1 // pred_check
      _
    $region15: #{tpu_custom_call.1} parent=1 // pred_check_branch
      %48 = sbr.rel (0) target = $region17
    $region16: #{tpu_custom_call.1} parent=1 // pred_region
      %49 = dma.done [#allocation3], 256
    $region17: #{tpu_custom_call.1} parent=1 // pred_fallthru
      _
    // Predicated region
    $region18: #{tpu_custom_call.1} parent=1 // pred_check
      _
    $region19: #{tpu_custom_call.1} parent=1 // pred_check_branch
      %51 = sbr.rel (0) target = $region21
    $region20: #{tpu_custom_call.1} parent=1 // pred_region
      %52 = dma.done [#allocation6], 256
    $region21: #{tpu_custom_call.1} parent=1 // pred_fallthru
      _
    // Predicated region
    $region22: #{tpu_custom_call.1} parent=1 // pred_check
      _
    $region23: #{tpu_custom_call.1} parent=1 // pred_check_branch
      %54 = sbr.rel (0) target = $region25
    $region24: #{tpu_custom_call.1} parent=1 // pred_region
      %55 = dma.done [#allocation6], 256
    $region25: #{tpu_custom_call.1} parent=1 // pred_fallthru
      _
    %p56 = scmp.eq.s32.totalorder 0, 0
    // Predicated region
    $region26: #{tpu_custom_call.1} parent=1 // pred_check
      %p57 = pneg %p56
    $region27: #{tpu_custom_call.1} parent=1 // pred_check_branch
      %59 = sbr.rel (%p57) target = $region29
    $region28: #{tpu_custom_call.1} parent=1 // pred_region
      %60 = vst [vmem:[#allocation8] sm:$0xff] 0.0
    $region29: #{tpu_custom_call.1} parent=1 // pred_fallthru
      _
    %v61 = vld [vmem:[#allocation2] sm:$0xff]
    %v62 = vld [vmem:[#allocation2 + $0x8] sm:$0xff]
    %v63 = vld [vmem:[#allocation5] sm:$0xff]
    %v64 = vld [vmem:[#allocation5 + $0x8] sm:$0xff]
    %v65 = vlog2.pop %v61
    %v66 = vmul.f32 %v65, 0.6931472
    %v67 = vlog2.pop %v62
    %v68 = vmul.f32 %v67, 0.6931472
    %v69 = vmax.f32 %v66, -100.0
    %v70 = vmax.f32 %v68, -100.0
    %v71 = vsub.f32 1.0, %v61
    %v72 = vsub.f32 1.0, %v62
    %v73 = vlog2.pop %v71
    %v74 = vmul.f32 %v73, 0.6931472
    %v75 = vlog2.pop %v72
    %v76 = vmul.f32 %v75, 0.6931472
    %v77 = vmax.f32 %v74, -100.0
    %v78 = vmax.f32 %v76, -100.0
    %v79 = vmul.f32 %v63, %v69
    %v80 = vmul.f32 %v64, %v70
    %v81 = vsub.f32 1.0, %v63
    %v82 = vsub.f32 1.0, %v64
    %v83 = vmul.f32 %v81, %v77
    %v84 = vmul.f32 %v82, %v78
    %v85 = vadd.f32 %v79, %v83
    %v86 = vadd.f32 %v80, %v84
    %v87 = vsub.f32 0.0, %v85
    %v88 = vsub.f32 0.0, %v86
    %v89 = vld [vmem:[#allocation7] sm:$0xff]
    %v90 = vld [vmem:[#allocation7 + $0x8] sm:$0xff]
    %v91 = vmul.f32 %v87, %v89
    %v92 = vmul.f32 %v88, %v90
    %v93 = vld [vmem:[#allocation8] sm:$0xff]
    %v94 = vadd.f32 %v91, %v92
    %v95 = vadd.f32 %v93, %v94
    %96 = vst [vmem:[#allocation8] sm:$0xff] %v95
    // Predicated region
    $region30: #{tpu_custom_call.1} parent=1 // pred_check
      _
    $region31: #{tpu_custom_call.1} parent=1 // pred_check_branch
      %98 = sbr.rel (0) target = $region33
    $region32: #{tpu_custom_call.1} parent=1 // pred_region
      %s100 = ssub.s32 128, 128
      %101 = vsyncadd [#allocation4], %s100
      %s103 = sshll.u32 [#allocation8], 4
      %s104 = int_to_ptr.vmem [resolvable:$true] %s103
      %106 = dma.vmem_to_hbm [thread:$0]  %s104, 128, %s3, [#allocation4]
    $region33: #{tpu_custom_call.1} parent=1 // pred_fallthru
      _
    // Predicated region
    $region34: #{tpu_custom_call.1} parent=1 // pred_check
      _
    $region35: #{tpu_custom_call.1} parent=1 // pred_check_branch
      %108 = sbr.rel (0) target = $region37
    $region36: #{tpu_custom_call.1} parent=1 // pred_region
      %109 = dma.done [#allocation4], 128
    $region37: #{tpu_custom_call.1} parent=1 // pred_fallthru
      _
    %110 = vsyncpa [#allocation3], 1
    %111 = vsyncpa [#allocation6], 1
    %112 = vsyncpa [#allocation4], 1

</llo_original>
